<compile_context>
chip_gen: v6e
topology: v6e:2x2x1
jax: 0.10.0
libtpu: 0.0.40
codegen_flags: <defaults>
</compile_context>

<pallas_src>
import jax
import jax.numpy as jnp
from jax.experimental import pallas as pl
from jax.experimental.pallas import tpu as pltpu


def _supcon_clip_margin_kernel(scalars_ref, mask_ref, tab_ref, ts_ref, out_ref):
    """Processes block_b loss instances per grid step.

    scalars_ref: (2,)  SMEM f32  -> [1/temperature, margin/temperature]
    mask_ref:    (Bb, N, N) f32  -> supervised mask (labels_i == labels_j)
    tab_ref:     (Bb, N, E)      -> tab_unique block
    ts_ref:      (Bb, N, E)      -> ts_anchor block
    out_ref:     (Bb, 1, 1) f32  -> per-instance loss
    """
    eps_sq = 1e-24  # (F.normalize eps=1e-12)^2, applied to the squared norm

    inv_temp = scalars_ref[0]          # 1 / temperature
    margin_over_temp = scalars_ref[1]  # margin / temperature

    tab = tab_ref[...].astype(jnp.float32)   # (Bb, N, E)
    ts = ts_ref[...].astype(jnp.float32)     # (Bb, N, E)
    mask = mask_ref[...]                     # (Bb, N, N) f32

    n = tab.shape[1]

    # ---- L2 normalize rows: rsqrt of squared sums (EUP), then multiply.
    # 1/temperature is folded into the tab scale (no (N,N) post-matmul scale).
    tab_inv = jax.lax.rsqrt(
        jnp.maximum(jnp.sum(tab * tab, axis=2, keepdims=True), eps_sq))  # (Bb,N,1)
    ts_inv = jax.lax.rsqrt(
        jnp.maximum(jnp.sum(ts * ts, axis=2, keepdims=True), eps_sq))    # (Bb,N,1)
    tab_n = tab * (tab_inv * inv_temp)
    ts_n = ts * ts_inv

    # ---- similarity on the MXU, contracting the last dims (no transposes). --
    sim = jnp.einsum('bne,bme->bnm', tab_n, ts_n,
                     preferred_element_type=jnp.float32)                  # (Bb,N,N)

    # ---- subtract (margin / temperature) on the diagonal ----
    r = jax.lax.broadcasted_iota(jnp.int32, sim.shape, 1)
    c = jax.lax.broadcasted_iota(jnp.int32, sim.shape, 2)
    sim = sim - jnp.where(r == c, margin_over_temp, jnp.float32(0.0))

    # ---- numerically stable per-instance log-sum-exp (shift cancels) -------
    m = jnp.max(jnp.max(sim, axis=2, keepdims=True), axis=1, keepdims=True)
    ss = sim - m
    ess = jnp.exp(ss)
    log_den_row = jnp.log(jnp.sum(ess, axis=2, keepdims=True))  # (Bb,N,1)
    log_den_col = jnp.log(jnp.sum(ess, axis=1, keepdims=True))  # (Bb,1,N)

    x1 = ss - log_den_row
    x2 = ss - log_den_col

    # ---- supervised-mask averages (mask precomputed in the wrapper) --------
    msum_row = jnp.sum(mask, axis=2, keepdims=True)              # (Bb,N,1)
    msum_col = jnp.sum(mask, axis=1, keepdims=True)              # (Bb,1,N)

    loss1 = jnp.sum(x1 * mask, axis=2, keepdims=True) / msum_row  # (Bb,N,1)
    loss2 = jnp.sum(x2 * mask, axis=1, keepdims=True) / msum_col  # (Bb,1,N)

    s1 = jnp.sum(loss1, axis=1, keepdims=True)                    # (Bb,1,1)
    s2 = jnp.sum(loss2, axis=2, keepdims=True)                    # (Bb,1,1)
    out_ref[...] = -(s1 + s2) * jnp.float32(0.5 / n)


def learn_margin_supcon_clip_loss_batched(tab_unique, ts_anchor, labels,
                                          margin, temperature=1.0, block_b=8):
    """Batched SupCLIP-with-margin loss.

    Args:
        tab_unique: (B, N, E) float embeddings ("unique token").
        ts_anchor:  (B, N, E) float embeddings ("anchor").
        labels:     (B, N)   integer class labels.
        margin:     scalar learnable margin value.
        temperature: scalar temperature.
        block_b:    instances packed per grid step (amortizes per-step cost).

    Returns:
        (B,) float32 per-instance losses.
    """
    b, n, e = tab_unique.shape
    block_b = max(1, min(block_b, b))
    b_pad = -(-b // block_b) * block_b
    if b_pad != b:
        pad = b_pad - b
        # Zero padding is numerically safe: zero rows normalize to zero,
        # all-equal labels give msum = N, results are sliced off below.
        tab_unique = jnp.pad(tab_unique, ((0, pad), (0, 0), (0, 0)))
        ts_anchor = jnp.pad(ts_anchor, ((0, pad), (0, 0), (0, 0)))
        labels = jnp.pad(labels, ((0, pad), (0, 0)))

    # Tiny XLA fusion -> single lane-dense f32 mask input (replaces two
    # lane-sparse label layouts).
    mask = (labels[:, :, None] == labels[:, None, :]).astype(jnp.float32)

    inv_temp = jnp.float32(1.0) / jnp.asarray(temperature, jnp.float32)
    scalars = jnp.stack(
        [inv_temp, jnp.asarray(margin, jnp.float32) * inv_temp]
    ).astype(jnp.float32)                                        # (2,)

    grid = (b_pad // block_b,)
    out = pl.pallas_call(
        _supcon_clip_margin_kernel,
        out_shape=jax.ShapeDtypeStruct((b_pad, 1, 1), jnp.float32),
        grid=grid,
        in_specs=[
            pl.BlockSpec(memory_space=pltpu.MemorySpace.SMEM),        # scalars
            pl.BlockSpec((block_b, n, n), lambda i: (i, 0, 0)),       # mask
            pl.BlockSpec((block_b, n, e), lambda i: (i, 0, 0)),       # tab_unique
            pl.BlockSpec((block_b, n, e), lambda i: (i, 0, 0)),       # ts_anchor
        ],
        out_specs=pl.BlockSpec((block_b, 1, 1), lambda i: (i, 0, 0)),
        compiler_params=pltpu.CompilerParams(
            dimension_semantics=("parallel",)),
    )(scalars, mask, tab_unique, ts_anchor)
    return out.reshape(b_pad)[:b]


def learn_margin_supcon_clip_loss(tab_unique, ts_anchor, labels,
                                  margin, temperature=1.0):
    """Single-instance forward matching LearnMarginSupConCLIPLoss.forward.

    Args:
        tab_unique: (N, E), ts_anchor: (N, E), labels: (N,).

    Returns:
        Scalar float32 loss.
    """
    losses = learn_margin_supcon_clip_loss_batched(
        tab_unique[None], ts_anchor[None], labels[None],
        margin, temperature, block_b=1)
    return losses[0]


def _reference_loss(tab_unique, ts_anchor, labels, margin, temperature=1.0):
    """Pure-JAX mirror of the PyTorch forward (for verification)."""
    labels = labels.reshape(-1, 1)
    mask = (labels == labels.T).astype(jnp.float32)

    def norm(x):
        nrm = jnp.sqrt(jnp.sum(x * x, axis=1, keepdims=True))
        return x / jnp.maximum(nrm, 1e-12)

    tu, ta = norm(tab_unique), norm(ts_anchor)
    sim = tu @ ta.T
    sim = sim - jnp.eye(sim.shape[0], dtype=sim.dtype) * margin
    sim = sim / temperature
    exp_sim = jnp.exp(sim)
    x1 = sim - jnp.log(jnp.sum(exp_sim, axis=1, keepdims=True))
    x2 = sim - jnp.log(jnp.sum(exp_sim, axis=0, keepdims=True))
    x1 = jnp.sum(x1 * mask, axis=1) / jnp.sum(mask, axis=1)
    x2 = jnp.sum(x2 * mask, axis=0) / jnp.sum(mask, axis=0)
    return (-jnp.mean(x1) - jnp.mean(x2)) / 2


if __name__ == "__main__":
    key = jax.random.PRNGKey(0)
    k1, k2, k3 = jax.random.split(key, 3)

    # Small shapes consistent with the module: batch N=8, embedding E=32,
    # B=16 independent loss instances for the batched/parallel path.
    B, N, E = 16, 8, 32
    tab_b = jax.random.normal(k1, (B, N, E), dtype=jnp.float32)
    ts_b = jax.random.normal(k2, (B, N, E), dtype=jnp.float32)
    labels_b = jax.random.randint(k3, (B, N), 0, 3, dtype=jnp.int32)
    margin = 0.25        # nonzero to exercise the learnable-margin path
    temperature = 0.5

    # --- single-instance path (module semantics) ---
    loss = learn_margin_supcon_clip_loss(
        tab_b[0], ts_b[0], labels_b[0], margin, temperature)
    loss = jax.block_until_ready(loss)
    ref = jax.block_until_ready(
        _reference_loss(tab_b[0], ts_b[0], labels_b[0], margin, temperature))
    assert jnp.allclose(loss, ref, rtol=1e-4, atol=1e-5), (loss, ref)

    # --- batched grid-parallel path (8 instances per grid step) ---
    losses = jax.block_until_ready(
        learn_margin_supcon_clip_loss_batched(
            tab_b, ts_b, labels_b, margin, temperature, block_b=8))
    refs = jax.block_until_ready(
        jax.vmap(lambda a, b_, l: _reference_loss(a, b_, l, margin, temperature))(
            tab_b, ts_b, labels_b))
    assert jnp.allclose(losses, refs, rtol=1e-4, atol=1e-5), (losses, refs)

    print("KERNEL_OK")
</pallas_src>

<mosaic_0001>
module attributes {stable_mosaic.version = 11 : i64} {
  func.func @_supcon_clip_margin_kernel(%arg0: i32, %arg1: memref<2xf32, #tpu.memory_space<smem>>, %arg2: memref<1x8x8xf32, #tpu.memory_space<vmem>>, %arg3: memref<1x8x32xf32, #tpu.memory_space<vmem>>, %arg4: memref<1x8x32xf32, #tpu.memory_space<vmem>>, %arg5: memref<1x1x1xf32, #tpu.memory_space<vmem>>) attributes {dimension_semantics = [#tpu.dimension_semantics<parallel>], iteration_bounds = array<i64: 1>, scalar_prefetch = 0 : i64, scratch_operands = 0 : i64, tpu.core_type = #tpu.core_type<tc>, window_params = [{transform_indices = @transform_0, window_bounds = array<i64: 2>}, {transform_indices = @transform_1, window_bounds = array<i64: 1, 8, 8>}, {transform_indices = @transform_2, window_bounds = array<i64: 1, 8, 32>}, {transform_indices = @transform_3, window_bounds = array<i64: 1, 8, 32>}, {transform_indices = @transform_4, window_bounds = array<i64: 1, 1, 1>}]} {
    %c0 = arith.constant 0 : index
    %0 = memref.load %arg1[%c0] : memref<2xf32, #tpu.memory_space<smem>>
    %c1 = arith.constant 1 : index
    %1 = memref.load %arg1[%c1] : memref<2xf32, #tpu.memory_space<smem>>
    %c0_0 = arith.constant 0 : index
    %c0_1 = arith.constant 0 : index
    %c0_2 = arith.constant 0 : index
    %2 = vector.load %arg3[%c0_0, %c0_1, %c0_2] : memref<1x8x32xf32, #tpu.memory_space<vmem>>, vector<1x8x32xf32>
    %c0_3 = arith.constant 0 : index
    %c0_4 = arith.constant 0 : index
    %c0_5 = arith.constant 0 : index
    %3 = vector.load %arg4[%c0_3, %c0_4, %c0_5] : memref<1x8x32xf32, #tpu.memory_space<vmem>>, vector<1x8x32xf32>
    %c0_6 = arith.constant 0 : index
    %c0_7 = arith.constant 0 : index
    %c0_8 = arith.constant 0 : index
    %4 = vector.load %arg2[%c0_6, %c0_7, %c0_8] : memref<1x8x8xf32, #tpu.memory_space<vmem>>, vector<1x8x8xf32>
    %5 = arith.mulf %2, %2 : vector<1x8x32xf32>
    %cst = arith.constant dense<0.000000e+00> : vector<1x8xf32>
    %6 = vector.multi_reduction <add>, %5, %cst [2] : vector<1x8x32xf32> to vector<1x8xf32>
    %7 = vector.shape_cast %6 : vector<1x8xf32> to vector<1x8x1xf32>
    %cst_9 = arith.constant 1.000000e-24 : f32
    %8 = vector.broadcast %cst_9 : f32 to vector<1x8x1xf32>
    %9 = arith.maximumf %7, %8 : vector<1x8x1xf32>
    %10 = math.rsqrt %9 : vector<1x8x1xf32>
    %11 = arith.mulf %3, %3 : vector<1x8x32xf32>
    %cst_10 = arith.constant dense<0.000000e+00> : vector<1x8xf32>
    %12 = vector.multi_reduction <add>, %11, %cst_10 [2] : vector<1x8x32xf32> to vector<1x8xf32>
    %13 = vector.shape_cast %12 : vector<1x8xf32> to vector<1x8x1xf32>
    %cst_11 = arith.constant 1.000000e-24 : f32
    %14 = vector.broadcast %cst_11 : f32 to vector<1x8x1xf32>
    %15 = arith.maximumf %13, %14 : vector<1x8x1xf32>
    %16 = math.rsqrt %15 : vector<1x8x1xf32>
    %17 = vector.broadcast %0 : f32 to vector<1x8x1xf32>
    %18 = arith.mulf %10, %17 : vector<1x8x1xf32>
    %19 = vector.broadcast %18 : vector<1x8x1xf32> to vector<1x8x32xf32>
    %20 = arith.mulf %2, %19 : vector<1x8x32xf32>
    %21 = vector.broadcast %16 : vector<1x8x1xf32> to vector<1x8x32xf32>
    %22 = arith.mulf %3, %21 : vector<1x8x32xf32>
    "tpu.trace_start"() <{level = 10 : i32, message = "bne,bme->bnm"}> : () -> ()
    %cst_12 = arith.constant dense<0.000000e+00> : vector<1x8x8xf32>
    %23 = tpu.matmul %20, %22, %cst_12 {dimension_numbers = #tpu.dot_dimension_numbers<[2], [2], [1], [1], [0, 0, 0, 1, 1, 1], [0], [0]>} : vector<1x8x32xf32>, vector<1x8x32xf32>, vector<1x8x8xf32> -> vector<1x8x8xf32>
    "tpu.trace_stop"() : () -> ()
    %24 = tpu.iota {dimensions = array<i32: 1>} : vector<1x8x8xi32>
    %25 = tpu.iota {dimensions = array<i32: 2>} : vector<1x8x8xi32>
    %26 = arith.cmpi eq, %24, %25 : vector<1x8x8xi32>
    %cst_13 = arith.constant 0.000000e+00 : f32
    %27 = vector.broadcast %1 : f32 to vector<1x8x8xf32>
    %28 = vector.broadcast %cst_13 : f32 to vector<1x8x8xf32>
    %29 = arith.select %26, %27, %28 : vector<1x8x8xi1>, vector<1x8x8xf32>
    %30 = arith.subf %23, %29 : vector<1x8x8xf32>
    %cst_14 = arith.constant dense<0xFF800000> : vector<1x8xf32>
    %31 = vector.multi_reduction <maximumf>, %30, %cst_14 [2] : vector<1x8x8xf32> to vector<1x8xf32>
    %32 = vector.shape_cast %31 : vector<1x8xf32> to vector<1x8x1xf32>
    %cst_15 = arith.constant dense<0xFF800000> : vector<1x1xf32>
    %33 = vector.multi_reduction <maximumf>, %32, %cst_15 [1] : vector<1x8x1xf32> to vector<1x1xf32>
    %34 = vector.shape_cast %33 : vector<1x1xf32> to vector<1x1x1xf32>
    %35 = vector.broadcast %34 : vector<1x1x1xf32> to vector<1x8x8xf32>
    %36 = arith.subf %30, %35 : vector<1x8x8xf32>
    %37 = math.exp %36 : vector<1x8x8xf32>
    %cst_16 = arith.constant dense<0.000000e+00> : vector<1x8xf32>
    %38 = vector.multi_reduction <add>, %37, %cst_16 [2] : vector<1x8x8xf32> to vector<1x8xf32>
    %39 = vector.shape_cast %38 : vector<1x8xf32> to vector<1x8x1xf32>
    %40 = math.log %39 : vector<1x8x1xf32>
    %cst_17 = arith.constant dense<0.000000e+00> : vector<1x8xf32>
    %41 = vector.multi_reduction <add>, %37, %cst_17 [1] : vector<1x8x8xf32> to vector<1x8xf32>
    %42 = vector.shape_cast %41 : vector<1x8xf32> to vector<1x1x8xf32>
    %43 = math.log %42 : vector<1x1x8xf32>
    %44 = vector.broadcast %40 : vector<1x8x1xf32> to vector<1x8x8xf32>
    %45 = arith.subf %36, %44 : vector<1x8x8xf32>
    %46 = vector.broadcast %43 : vector<1x1x8xf32> to vector<1x8x8xf32>
    %47 = arith.subf %36, %46 : vector<1x8x8xf32>
    %cst_18 = arith.constant dense<0.000000e+00> : vector<1x8xf32>
    %48 = vector.multi_reduction <add>, %4, %cst_18 [2] : vector<1x8x8xf32> to vector<1x8xf32>
    %49 = vector.shape_cast %48 : vector<1x8xf32> to vector<1x8x1xf32>
    %cst_19 = arith.constant dense<0.000000e+00> : vector<1x8xf32>
    %50 = vector.multi_reduction <add>, %4, %cst_19 [1] : vector<1x8x8xf32> to vector<1x8xf32>
    %51 = vector.shape_cast %50 : vector<1x8xf32> to vector<1x1x8xf32>
    %52 = arith.mulf %45, %4 : vector<1x8x8xf32>
    %cst_20 = arith.constant dense<0.000000e+00> : vector<1x8xf32>
    %53 = vector.multi_reduction <add>, %52, %cst_20 [2] : vector<1x8x8xf32> to vector<1x8xf32>
    %54 = vector.shape_cast %53 : vector<1x8xf32> to vector<1x8x1xf32>
    %55 = arith.divf %54, %49 : vector<1x8x1xf32>
    %56 = arith.mulf %47, %4 : vector<1x8x8xf32>
    %cst_21 = arith.constant dense<0.000000e+00> : vector<1x8xf32>
    %57 = vector.multi_reduction <add>, %56, %cst_21 [1] : vector<1x8x8xf32> to vector<1x8xf32>
    %58 = vector.shape_cast %57 : vector<1x8xf32> to vector<1x1x8xf32>
    %59 = arith.divf %58, %51 : vector<1x1x8xf32>
    %cst_22 = arith.constant dense<0.000000e+00> : vector<1x1xf32>
    %60 = vector.multi_reduction <add>, %55, %cst_22 [1] : vector<1x8x1xf32> to vector<1x1xf32>
    %61 = vector.shape_cast %60 : vector<1x1xf32> to vector<1x1x1xf32>
    %cst_23 = arith.constant dense<0.000000e+00> : vector<1x1xf32>
    %62 = vector.multi_reduction <add>, %59, %cst_23 [2] : vector<1x1x8xf32> to vector<1x1xf32>
    %63 = vector.shape_cast %62 : vector<1x1xf32> to vector<1x1x1xf32>
    %64 = arith.addf %61, %63 : vector<1x1x1xf32>
    %cst_24 = arith.constant 0.000000e+00 : f32
    %65 = vector.broadcast %cst_24 : f32 to vector<1x1x1xf32>
    %66 = arith.subf %65, %64 : vector<1x1x1xf32>
    %cst_25 = arith.constant 6.250000e-02 : f32
    %67 = vector.broadcast %cst_25 : f32 to vector<1x1x1xf32>
    %68 = arith.mulf %66, %67 : vector<1x1x1xf32>
    %c0_26 = arith.constant 0 : index
    %c0_27 = arith.constant 0 : index
    %c0_28 = arith.constant 0 : index
    %69 = vector.load %arg5[%c0_26, %c0_27, %c0_28] : memref<1x1x1xf32, #tpu.memory_space<vmem>>, vector<1x1x1xf32>
    tpu.vector_store %arg5[%c0_26, %c0_27, %c0_28], %68 {strides = array<i32>} : memref<1x1x1xf32, #tpu.memory_space<vmem>>, vector<1x1x1xf32>,
    return
  }
  func.func @transform_0(%arg0: i32) -> i32 {
    %c0_i32 = arith.constant 0 : i32
    %c0_i32_0 = arith.constant 0 : i32
    return %c0_i32 : i32
  }
  func.func @transform_1(%arg0: i32) -> (i32, i32, i32) {
    %c0_i32 = arith.constant 0 : i32
    %c0_i32_0 = arith.constant 0 : i32
    %c0_i32_1 = arith.constant 0 : i32
    return %arg0, %c0_i32, %c0_i32_0 : i32, i32, i32
  }
  func.func @transform_2(%arg0: i32) -> (i32, i32, i32) {
    %c0_i32 = arith.constant 0 : i32
    %c0_i32_0 = arith.constant 0 : i32
    %c0_i32_1 = arith.constant 0 : i32
    return %arg0, %c0_i32, %c0_i32_0 : i32, i32, i32
  }
  func.func @transform_3(%arg0: i32) -> (i32, i32, i32) {
    %c0_i32 = arith.constant 0 : i32
    %c0_i32_0 = arith.constant 0 : i32
    %c0_i32_1 = arith.constant 0 : i32
    return %arg0, %c0_i32, %c0_i32_0 : i32, i32, i32
  }
  func.func @transform_4(%arg0: i32) -> (i32, i32, i32) {
    %c0_i32 = arith.constant 0 : i32
    %c0_i32_0 = arith.constant 0 : i32
    %c0_i32_1 = arith.constant 0 : i32
    return %arg0, %c0_i32, %c0_i32_0 : i32, i32, i32
  }
}

</mosaic_0001>

<llo_original>
// kernel: tpu_custom_call.1
$region0: #{tpu_custom_call.1}
  #allocation0 [shape = 'u32[]', space=smem, size = 0x4, offset = 0x4, fixed_abs, tag = 'smem constant byte address 0x4 - core index']
  #allocation1 [shape = 'u32[144,128]{1,0:T(1,128)}', space=vmem, size = 0x12000, scoped, tag = 'internal scratch']
  %s0 = inlined_call_operand.hbm [shape: f32[2], index: 0, kind: input, shape index: {}]
  %s1 = inlined_call_operand.hbm [shape: f32[1,8,8], index: 1, kind: input, shape index: {}]
  %s2 = inlined_call_operand.hbm [shape: f32[1,8,32], index: 2, kind: input, shape index: {}]
  %s3 = inlined_call_operand.hbm [shape: f32[1,8,32], index: 3, kind: input, shape index: {}]
  %s4 = inlined_call_operand.hbm [shape: f32[1,1,1], index: 4, kind: output, shape index: {}]
  %s5 = sld [smem:[#allocation0]]
  $region42: #{tpu_custom_call.1} parent=0
    _
  %s7 = ssub.s32 1, %s5
  %s8 = scalar_select 0, %s7, %s5
  $region1: #{tpu_custom_call.1} parent=0
    #allocation2 [shape = 'u8[512]{0}', space=smem, size = 0x200, scoped, tag = 'input window, operand 0, single buffered']
    #allocation3 [shape = 's32[1]{0}', space=sflag, size = 0x4, scoped, tag = 'scoped memory for tpu_custom_call.1']
    #allocation4 [shape = 's32[1]{0}', space=sflag, size = 0x4, scoped, tag = 'scoped memory for tpu_custom_call.1']
    #allocation5 [shape = 's32[1]{0}', space=sflag, size = 0x4, scoped, tag = 'scoped memory for tpu_custom_call.1']
    #allocation6 [shape = 'u8[4096]{0}', space=vmem, size = 0x1000, scoped, tag = 'input window, operand 1, single buffered']
    #allocation7 [shape = 'u8[4096]{0}', space=vmem, size = 0x1000, scoped, tag = 'input window, operand 2, single buffered']
    #allocation8 [shape = 's32[1]{0}', space=sflag, size = 0x4, scoped, tag = 'scoped memory for tpu_custom_call.1']
    #allocation9 [shape = 'u8[4096]{0}', space=vmem, size = 0x1000, scoped, tag = 'input window, operand 3, single buffered']
    #allocation10 [shape = 'u8[512]{0}', space=vmem, size = 0x400, scoped, tag = 'output window, operand 0, single buffered']
    %9 = vsyncpa [#allocation5], 0
    %10 = vsyncpa [#allocation3], 0
    %11 = vsyncpa [#allocation8], 0
    %12 = vsyncpa [#allocation4], 0
    // Predicated region
    $region2: #{tpu_custom_call.1} parent=1 // pred_check
      _
    $region3: #{tpu_custom_call.1} parent=1 // pred_check_branch
      %14 = sbr.rel (0) target = $region5
    $region4: #{tpu_custom_call.1} parent=1 // pred_region
      %s16 = ssub.s32 16, 16
      %17 = vsyncadd [#allocation5], %s16
      %20 = dma.hbm_to_smem %s0, 16, [#allocation2], [#allocation5]
    $region5: #{tpu_custom_call.1} parent=1 // pred_fallthru
      _
    // Predicated region
    $region6: #{tpu_custom_call.1} parent=1 // pred_check
      _
    $region7: #{tpu_custom_call.1} parent=1 // pred_check_branch
      %22 = sbr.rel (0) target = $region9
    $region8: #{tpu_custom_call.1} parent=1 // pred_region
      %s24 = ssub.s32 128, 128
      %25 = vsyncadd [#allocation3], %s24
      %s27 = sshll.u32 [#allocation6], 4
      %s28 = int_to_ptr.vmem [resolvable:$true] %s27
      %30 = dma.hbm_to_vmem [thread:$0]  %s1, 128, %s28, [#allocation3]
    $region9: #{tpu_custom_call.1} parent=1 // pred_fallthru
      _
    // Predicated region
    $region10: #{tpu_custom_call.1} parent=1 // pred_check
      _
    $region11: #{tpu_custom_call.1} parent=1 // pred_check_branch
      %32 = sbr.rel (0) target = $region13
    $region12: #{tpu_custom_call.1} parent=1 // pred_region
      %s34 = ssub.s32 128, 128
      %35 = vsyncadd [#allocation8], %s34
      %s37 = sshll.u32 [#allocation7], 4
      %s38 = int_to_ptr.vmem [resolvable:$true] %s37
      %40 = dma.hbm_to_vmem [thread:$0]  %s2, 128, %s38, [#allocation8]
    $region13: #{tpu_custom_call.1} parent=1 // pred_fallthru
      _
    // Predicated region
    $region14: #{tpu_custom_call.1} parent=1 // pred_check
      _
    $region15: #{tpu_custom_call.1} parent=1 // pred_check_branch
      %42 = sbr.rel (0) target = $region17
    $region16: #{tpu_custom_call.1} parent=1 // pred_region
      %s44 = ssub.s32 128, 128
      %45 = vsyncadd [#allocation8], %s44
      %s47 = sshll.u32 [#allocation9], 4
      %s48 = int_to_ptr.vmem [resolvable:$true] %s47
      %50 = dma.hbm_to_vmem [thread:$0]  %s3, 128, %s48, [#allocation8]
    $region17: #{tpu_custom_call.1} parent=1 // pred_fallthru
      _
    // Predicated region
    $region18: #{tpu_custom_call.1} parent=1 // pred_check
      _
    $region19: #{tpu_custom_call.1} parent=1 // pred_check_branch
      %52 = sbr.rel (0) target = $region21
    $region20: #{tpu_custom_call.1} parent=1 // pred_region
      %53 = dma.done [#allocation5], 16
    $region21: #{tpu_custom_call.1} parent=1 // pred_fallthru
      _
    // Predicated region
    $region22: #{tpu_custom_call.1} parent=1 // pred_check
      _
    $region23: #{tpu_custom_call.1} parent=1 // pred_check_branch
      %55 = sbr.rel (0) target = $region25
    $region24: #{tpu_custom_call.1} parent=1 // pred_region
      %56 = dma.done [#allocation3], 128
    $region25: #{tpu_custom_call.1} parent=1 // pred_fallthru
      _
    // Predicated region
    $region26: #{tpu_custom_call.1} parent=1 // pred_check
      _
    $region27: #{tpu_custom_call.1} parent=1 // pred_check_branch
      %58 = sbr.rel (0) target = $region29
    $region28: #{tpu_custom_call.1} parent=1 // pred_region
      %59 = dma.done [#allocation8], 128
    $region29: #{tpu_custom_call.1} parent=1 // pred_fallthru
      _
    // Predicated region
    $region30: #{tpu_custom_call.1} parent=1 // pred_check
      _
    $region31: #{tpu_custom_call.1} parent=1 // pred_check_branch
      %61 = sbr.rel (0) target = $region33
    $region32: #{tpu_custom_call.1} parent=1 // pred_region
      %62 = dma.done [#allocation8], 128
    $region33: #{tpu_custom_call.1} parent=1 // pred_fallthru
      _
    %63 = sfence
    %s64 = sld [smem:[#allocation2]]
    %s65 = sld [smem:[#allocation2 + $0x1]]
    %v66 = vld [vmem:[#allocation7] sm:$0xff]
    %v67 = vld [vmem:[#allocation9] sm:$0xff]
    %v68 = vld [vmem:[#allocation6] sm:$0xff]
    %v69 = vmul.f32 %v66, %v66
    %vm70 = vcmask 261120
    %v71 = vsel %vm70, %v69, 0.0
    %72 = vadd.xlane.f32.xlu0 %v71
    %v73 = vpop.xlane.xlu0 %72
    %v74 = vmax.f32 %v73, 1e-24
    %v75 = vrsqrt.pop %v74
    %v76 = vmul.f32 %v67, %v67
    %v77 = vsel %vm70, %v76, 0.0
    %78 = vadd.xlane.f32.xlu0 %v77
    %v79 = vpop.xlane.xlu0 %78
    %v80 = vmax.f32 %v79, 1e-24
    %v81 = vrsqrt.pop %v80
    %v82 = vstv %s64
    %v83 = vmul.f32 %v75, %v82
    %v84 = vmul.f32 %v66, %v83
    %v85 = vmul.f32 %v67, %v81
    %v87 = vsel %vm70, %v84, 0
    %v90 = vsel %vm70, %v85, 0
    %92 = vmatprep.subr.mxu0 0.0
    %93 = vmatpush1.xpose.msra.mxu0 0.0
    %94 = vmatprep.subr.mxu0 0.0
    %95 = vmatpush1.xpose.msra.mxu0 0.0
    %96 = vmatprep.subr.mxu0 0.0
    %97 = vmatpush1.xpose.msra.mxu0 0.0
    %98 = vmatprep.subr.mxu0 0.0
    %99 = vmatpush1.xpose.msra.mxu0 0.0
    %100 = vmatprep.subr.mxu0 0.0
    %101 = vmatpush1.xpose.msra.mxu0 0.0
    %102 = vmatprep.subr.mxu0 0.0
    %103 = vmatpush1.xpose.msra.mxu0 0.0
    %104 = vmatprep.subr.mxu0 0.0
    %105 = vmatpush1.xpose.msra.mxu0 0.0
    %106 = vmatprep.subr.mxu0 0.0
    %107 = vmatpush1.xpose.msra.mxu0 0.0
    %108 = vmatprep.subr.mxu0 0.0
    %109 = vmatpush1.xpose.msra.mxu0 0.0
    %110 = vmatprep.subr.mxu0 0.0
    %111 = vmatpush1.xpose.msra.mxu0 0.0
    %112 = vmatprep.subr.mxu0 0.0
    %113 = vmatpush1.xpose.msra.mxu0 0.0
    %114 = vmatprep.subr.mxu0 0.0
    %115 = vmatpush1.xpose.msra.mxu0 0.0
    %116 = vmatprep.subr.mxu0 0.0
    %117 = vmatpush1.xpose.msra.mxu0 0.0
    %118 = vmatprep.subr.mxu0 0.0
    %119 = vmatpush1.xpose.msra.mxu0 0.0
    %120 = vmatprep.subr.mxu0 0.0
    %121 = vmatpush1.xpose.msra.mxu0 0.0
    %122 = vmatprep.subr.mxu0 0.0
    %123 = vmatpush1.xpose.msra.mxu0 %v90
    %124 = vmatprep.subr.mxu0 0.0
    %125 = vmatpush2.xpose.msra.mxu0 0.0
    %126 = vmatprep.subr.mxu0 0.0
    %127 = vmatpush2.xpose.msra.mxu0 0.0
    %128 = vmatprep.subr.mxu0 0.0
    %129 = vmatpush2.xpose.msra.mxu0 0.0
    %130 = vmatprep.subr.mxu0 0.0
    %131 = vmatpush2.xpose.msra.mxu0 0.0
    %132 = vmatprep.subr.mxu0 0.0
    %133 = vmatpush2.xpose.msra.mxu0 0.0
    %134 = vmatprep.subr.mxu0 0.0
    %135 = vmatpush2.xpose.msra.mxu0 0.0
    %136 = vmatprep.subr.mxu0 0.0
    %137 = vmatpush2.xpose.msra.mxu0 0.0
    %138 = vmatprep.subr.mxu0 0.0
    %139 = vmatpush2.xpose.msra.mxu0 0.0
    %140 = vmatprep.subr.mxu0 0.0
    %141 = vmatpush2.xpose.msra.mxu0 0.0
    %142 = vmatprep.subr.mxu0 0.0
    %143 = vmatpush2.xpose.msra.mxu0 0.0
    %144 = vmatprep.subr.mxu0 0.0
    %145 = vmatpush2.xpose.msra.mxu0 0.0
    %146 = vmatprep.subr.mxu0 0.0
    %147 = vmatpush2.xpose.msra.mxu0 0.0
    %148 = vmatprep.subr.mxu0 0.0
    %149 = vmatpush2.xpose.msra.mxu0 0.0
    %150 = vmatprep.subr.mxu0 0.0
    %151 = vmatpush2.xpose.msra.mxu0 0.0
    %152 = vmatprep.subr.mxu0 0.0
    %153 = vmatpush2.xpose.msra.mxu0 0.0
    %154 = vmatprep.subr.mxu0 0.0
    %155 = vmatpush2.xpose.msra.mxu0 0.0
    %156 = vmatprep.mubr.f32.mxu0 0.0
    %157 = vmatmul.mubr.f32.gmra.mxu0 %v87
    %v158 = vpop.f32.mrf.mxu0
    %v159 = vadd.f32 0.0, %v158
    %v160 = vpop.f32.mrf.mxu0
    %161 = vdwg.mxu0
    %v162 = vlaneseq
    %v163 = vshrl.u32 %v162, 7
    %v164 = vlaneseq
    %v165 = vand.u32 %v164, 127
    %vm166 = vcmp.eq.s32.totalorder %v163, %v165
    %v167 = vstv %s65
    %v168 = vsel %vm166, %v167, 0.0
    %v169 = vsub.f32 %v159, %v168
    %vm170 = vcmask 64512
    %v171 = vsel %vm170, %v169, -inf
    %172 = vmax.xlane.f32.xlu0 %v171
    %v173 = vpop.xlane.xlu0 %172
    %v174 = vrot.slane %v173, 4
    %v175 = vmax.f32 %v173, %v174
    %v176 = vrot.slane %v175, 2
    %v177 = vmax.f32 %v175, %v176
    %v178 = vrot.slane %v177, 1
    %v179 = vmax.f32 %v177, %v178
    %v180 = vsub.f32 %v169, %v179
    %v181 = vmul.f32 %v180, 1.442695
    %v182 = vpow.pop %v181
    %v183 = vsel %vm170, %v182, 0.0
    %184 = vadd.xlane.f32.xlu0 %v183
    %v185 = vpop.xlane.xlu0 %184
    %v186 = vlog2.pop %v185
    %v187 = vmul.f32 %v186, 0.6931472
    %v188 = vrot.slane %v183, 4
    %v189 = vadd.f32 %v183, %v188
    %v190 = vrot.slane %v189, 2
    %v191 = vadd.f32 %v189, %v190
    %v192 = vrot.slane %v191, 1
    %v193 = vadd.f32 %v191, %v192
    %v194 = vlog2.pop %v193
    %v195 = vmul.f32 %v194, 0.6931472
    %v196 = vsub.f32 %v180, %v187
    %v197 = vsub.f32 %v180, %v195
    %v198 = vsel %vm170, %v68, 0.0
    %199 = vadd.xlane.f32.xlu0 %v198
    %v200 = vpop.xlane.xlu0 %199
    %v201 = vrot.slane %v198, 4
    %v202 = vadd.f32 %v198, %v201
    %v203 = vrot.slane %v202, 2
    %v204 = vadd.f32 %v202, %v203
    %v205 = vrot.slane %v204, 1
    %v206 = vadd.f32 %v204, %v205
    %v207 = vmul.f32 %v196, %v68
    %v208 = vsel %vm170, %v207, 0.0
    %209 = vadd.xlane.f32.xlu0 %v208
    %v210 = vpop.xlane.xlu0 %209
    %v211 = vrcp.pop %v200
    %v212 = vmul.f32 %v210, %v211
    %v213 = vmul.f32 %v197, %v68
    %v214 = vsel %vm170, %v213, 0.0
    %v215 = vrot.slane %v214, 4
    %v216 = vadd.f32 %v214, %v215
    %v217 = vrot.slane %v216, 2
    %v218 = vadd.f32 %v216, %v217
    %v219 = vrot.slane %v218, 1
    %v220 = vadd.f32 %v218, %v219
    %v221 = vrcp.pop %v206
    %v222 = vmul.f32 %v220, %v221
    %v223 = vrot.slane %v212, 4
    %v224 = vadd.f32 %v212, %v223
    %v225 = vrot.slane %v224, 2
    %v226 = vadd.f32 %v224, %v225
    %v227 = vrot.slane %v226, 1
    %v228 = vadd.f32 %v226, %v227
    %v229 = vsel %vm170, %v222, 0.0
    %230 = vadd.xlane.f32.xlu0 %v229
    %v231 = vpop.xlane.xlu0 %230
    %v232 = vadd.f32 %v228, %v231
    %v233 = vsub.f32 0.0, %v232
    %v234 = vmul.f32 %v233, 0.0625
    %vm235 = vcmask 0
    %236 = vst.msk [vmem:[#allocation10] sm:$0x1] %vm235, %v234
    // Predicated region
    $region34: #{tpu_custom_call.1} parent=1 // pred_check
      _
    $region35: #{tpu_custom_call.1} parent=1 // pred_check_branch
      %238 = sbr.rel (0) target = $region37
    $region36: #{tpu_custom_call.1} parent=1 // pred_region
      %s240 = ssub.s32 16, 16
      %241 = vsyncadd [#allocation4], %s240
      %s243 = sshll.u32 [#allocation10], 4
      %s244 = int_to_ptr.vmem [resolvable:$true] %s243
      %246 = dma.vmem_to_hbm [thread:$0]  %s244, 16, %s4, [#allocation4]
    $region37: #{tpu_custom_call.1} parent=1 // pred_fallthru
      _
    // Predicated region
    $region38: #{tpu_custom_call.1} parent=1 // pred_check
      _
    $region39: #{tpu_custom_call.1} parent=1 // pred_check_branch
      %248 = sbr.rel (0) target = $region41
    $region40: #{tpu_custom_call.1} parent=1 // pred_region
      %249 = dma.done [#allocation4], 16
    $region41: #{tpu_custom_call.1} parent=1 // pred_fallthru
      _
    %250 = vsyncpa [#allocation3], 1
    %251 = vsyncpa [#allocation8], 1
    %252 = vsyncpa [#allocation4], 1
    %253 = vsyncpa [#allocation5], 1

</llo_original>
